<compile_context>
chip_gen: v5e
topology: v5e:2x2
jax: 0.10.0
libtpu: 0.0.40
codegen_flags: <defaults>
</compile_context>

<pallas_src>
import jax
import jax.numpy as jnp
from jax.experimental import pallas as pl
from jax.experimental.pallas import tpu as pltpu


def control_kernel(
    ei0c_ref, ei1c_ref,            # int32 [E, 1]: edge_index[0], edge_index[1] (column form)
    ei1r_ref,                      # int32 [1, E]: edge_index[1] (row form, for scatter)
    nfeat_ref,                     # [N, 2+D]  = concat([xf, node_f], axis=1) (done in wrapper)
    nf_ref,                        # [N, D]    node_f (for the pre-trained ode model)
    w_ode_ref, b_ode_ref,          # [D, D], [1, D]
    wn1_ref, bn1_ref,              # node-encoder L1 (fused): [2+D, H], [1, H]
    wn2_ref, bn2_ref,              # node-encoder L2:         [H, H],   [1, H]
    we1_ref, be1_ref,              # edge-encoder L1 (fused): [2H, H],  [1, H]
    we2_ref, be2_ref,              # edge-encoder L2:         [H, H],   [1, H]
    wd_ref, bd_ref,                # node-decoder (fused, P folded): [2H, D], [1, D]
    out_ref,                       # [N, D]
):
    f32 = jnp.float32
    N = nf_ref.shape[0]
    E = ei0c_ref.shape[0]

    nf = nf_ref[...]

    # --- ode_model (torch.no_grad branch): node_n = node_f @ W_ode + b_ode ---
    node_n = jnp.dot(nf, w_ode_ref[...], preferred_element_type=f32) + b_ode_ref[...]

    # --- U: node encoder on cat([xf, node_f], dim=1) (fused weight, single matmul) ---
    h = jnp.dot(nfeat_ref[...], wn1_ref[...], preferred_element_type=f32) + bn1_ref[...]
    h = jnp.maximum(h, 0.0)
    node_emb = jnp.dot(h, wn2_ref[...], preferred_element_type=f32) + bn2_ref[...]   # [N, H]

    # --- edge gather node_emb[edge_index[k]] via one-hot matmuls (MXU) ---
    # One-hots built directly in [E, N] orientation -> plain jnp.dot, no transpose.
    iota_en = jax.lax.broadcasted_iota(jnp.int32, (E, N), 1)
    G0T = (iota_en == ei0c_ref[...]).astype(f32)   # [E, N]
    G1T = (iota_en == ei1c_ref[...]).astype(f32)   # [E, N]
    g0 = jnp.dot(G0T, node_emb, preferred_element_type=f32)   # [E, H]
    g1 = jnp.dot(G1T, node_emb, preferred_element_type=f32)   # [E, H]

    # --- edge encoder on cat([emb[ei0], emb[ei1]], dim=1) (fused weight) ---
    ef = jnp.concatenate([g0, g1], axis=1)                                          # [E, 2H]
    he = jnp.dot(ef, we1_ref[...], preferred_element_type=f32) + be1_ref[...]
    he = jnp.maximum(he, 0.0)
    edge_emb = jnp.dot(he, we2_ref[...], preferred_element_type=f32) + be2_ref[...]  # [E, H]

    # --- scatter_add(edge_emb, edge_index[1], dim=0) == G1 @ edge_emb ---
    iota_ne = jax.lax.broadcasted_iota(jnp.int32, (N, E), 0)
    G1 = (iota_ne == ei1r_ref[...]).astype(f32)                                      # [N, E]
    node_agg = jnp.dot(G1, edge_emb, preferred_element_type=f32)                     # [N, H]

    # --- node decoder on cat([node_emb, node_agg], dim=1); P already folded into wd ---
    cat = jnp.concatenate([node_emb, node_agg], axis=1)                              # [N, 2H]
    vel = jnp.dot(cat, wd_ref[...], preferred_element_type=f32) + bd_ref[...]        # [N, D]

    # --- node_n[:, -2:] += vel_control  (vel already placed into last 2 cols) ---
    out_ref[...] = node_n + vel


def control_forward(t, node_f, params, edge_index):
    del t  # t is unused by the linear ode_model and by U (matches reference semantics)
    N, D = node_f.shape
    H = params["wn2"].shape[0]
    E = edge_index.shape[1]

    ei0c = edge_index[0].reshape(E, 1).astype(jnp.int32)
    ei1c = edge_index[1].reshape(E, 1).astype(jnp.int32)
    ei1r = edge_index[1].reshape(1, E).astype(jnp.int32)

    # Fuse the concat weights / fold the placement matrix (constant-folded when
    # this wrapper runs under jit with static params).
    nfeat = jnp.concatenate([params["xf"], node_f], axis=1)            # [N, 2+D]
    wn1 = jnp.concatenate([params["wn1a"], params["wn1b"]], axis=0)    # [2+D, H]
    we1 = jnp.concatenate([params["we1a"], params["we1b"]], axis=0)    # [2H, H]
    P = jnp.zeros((2, D), jnp.float32).at[0, D - 2].set(1.0).at[1, D - 1].set(1.0)
    wd_p = jnp.concatenate([params["wda"], params["wdb"]], axis=0) @ P  # [2H, D]
    bd_p = params["bd"] @ P                                             # [1, D]

    args = (ei0c, ei1c, ei1r, nfeat, node_f,
            params["w_ode"], params["b_ode"],
            wn1, params["bn1"],
            params["wn2"], params["bn2"],
            we1, params["be1"],
            params["we2"], params["be2"],
            wd_p, bd_p)

    flops = 2 * (N * D * D            # ode model
                 + N * (2 + D) * H    # node encoder L1 (fused)
                 + N * H * H          # node encoder L2
                 + 2 * E * N * H      # two one-hot gathers
                 + E * (2 * H) * H    # edge encoder L1 (fused)
                 + E * H * H          # edge encoder L2
                 + N * E * H          # scatter_add
                 + N * (2 * H) * D)   # decoder (fused, P folded)
    bytes_accessed = sum(int(a.size) * a.dtype.itemsize for a in args) + N * D * 4
    cost = pl.CostEstimate(flops=flops, transcendentals=0,
                           bytes_accessed=bytes_accessed)

    vmem = pl.BlockSpec(memory_space=pltpu.MemorySpace.VMEM)
    return pl.pallas_call(
        control_kernel,
        out_shape=jax.ShapeDtypeStruct((N, D), jnp.float32),
        in_specs=[vmem] * len(args),
        out_specs=vmem,
        cost_estimate=cost,
    )(*args)


def ref_forward(node_f, params, edge_index):
    """Pure-JAX reference (mirrors the PyTorch forward)."""
    N = node_f.shape[0]
    node_n = node_f @ params["w_ode"] + params["b_ode"]                       # ode_model
    node_feature = jnp.concatenate([params["xf"], node_f], axis=1)
    w1 = jnp.concatenate([params["wn1a"], params["wn1b"]], axis=0)
    h = jnp.maximum(node_feature @ w1 + params["bn1"], 0.0)
    node_emb = h @ params["wn2"] + params["bn2"]
    g0 = node_emb[edge_index[0]]
    g1 = node_emb[edge_index[1]]
    edge_feature = jnp.concatenate([g0, g1], axis=1)
    we1 = jnp.concatenate([params["we1a"], params["we1b"]], axis=0)
    he = jnp.maximum(edge_feature @ we1 + params["be1"], 0.0)
    edge_emb = he @ params["we2"] + params["be2"]
    node_agg = jax.ops.segment_sum(edge_emb, edge_index[1], num_segments=N)   # scatter_add
    cat = jnp.concatenate([node_emb, node_agg], axis=1)
    wd = jnp.concatenate([params["wda"], params["wdb"]], axis=0)
    vel = cat @ wd + params["bd"]
    return node_n.at[:, -2:].add(vel)


def make_params(key, N, D, H):
    ks = jax.random.split(key, 16)
    p = {
        "xf":   jax.random.normal(ks[0], (N, 2), jnp.float32),
        "w_ode": 0.1 * jax.random.normal(ks[1], (D, D), jnp.float32),
        "b_ode": 0.1 * jax.random.normal(ks[2], (1, D), jnp.float32),
        "wn1a": 0.1 * jax.random.normal(ks[3], (2, H), jnp.float32),
        "wn1b": 0.1 * jax.random.normal(ks[4], (D, H), jnp.float32),
        "bn1":  0.1 * jax.random.normal(ks[5], (1, H), jnp.float32),
        "wn2":  0.1 * jax.random.normal(ks[6], (H, H), jnp.float32),
        "bn2":  0.1 * jax.random.normal(ks[7], (1, H), jnp.float32),
        "we1a": 0.1 * jax.random.normal(ks[8], (H, H), jnp.float32),
        "we1b": 0.1 * jax.random.normal(ks[9], (H, H), jnp.float32),
        "be1":  0.1 * jax.random.normal(ks[10], (1, H), jnp.float32),
        "we2":  0.1 * jax.random.normal(ks[11], (H, H), jnp.float32),
        "be2":  0.1 * jax.random.normal(ks[12], (1, H), jnp.float32),
        "wda":  0.1 * jax.random.normal(ks[13], (H, 2), jnp.float32),
        "wdb":  0.1 * jax.random.normal(ks[14], (H, 2), jnp.float32),
        "bd":   0.1 * jax.random.normal(ks[15], (1, 2), jnp.float32),
    }
    return p


if __name__ == "__main__":
    # model_size (N) = 8 nodes, model_dim (D) = 4, hid_dim (H) = 32
    N, D, H = 8, 4, 32
    key = jax.random.PRNGKey(0)
    k_in, k_par = jax.random.split(key)

    node_f = jax.random.normal(k_in, (N, D), jnp.float32)
    params = make_params(k_par, N, D, H)

    # bidirectional ring graph: E = 2 * N edges
    src = jnp.concatenate([jnp.arange(N), (jnp.arange(N) + 1) % N])
    dst = jnp.concatenate([(jnp.arange(N) + 1) % N, jnp.arange(N)])
    edge_index = jnp.stack([src, dst]).astype(jnp.int32)   # [2, E]

    t = jnp.float32(0.0)
    out = control_forward(t, node_f, params, edge_index)
    out = jax.block_until_ready(out)

    ref = ref_forward(node_f, params, edge_index)
    assert out.shape == (N, D) and out.dtype == jnp.float32
    assert jnp.allclose(out, ref, atol=1e-5, rtol=1e-5), (out, ref)
    print("KERNEL_OK")
</pallas_src>

<mosaic_0001>
module attributes {stable_mosaic.version = 11 : i64} {
  func.func @control_kernel(%arg0: memref<16x1xi32, #tpu.memory_space<vmem>>, %arg1: memref<16x1xi32, #tpu.memory_space<vmem>>, %arg2: memref<1x16xi32, #tpu.memory_space<vmem>>, %arg3: memref<8x6xf32, #tpu.memory_space<vmem>>, %arg4: memref<8x4xf32, #tpu.memory_space<vmem>>, %arg5: memref<4x4xf32, #tpu.memory_space<vmem>>, %arg6: memref<1x4xf32, #tpu.memory_space<vmem>>, %arg7: memref<6x32xf32, #tpu.memory_space<vmem>>, %arg8: memref<1x32xf32, #tpu.memory_space<vmem>>, %arg9: memref<32x32xf32, #tpu.memory_space<vmem>>, %arg10: memref<1x32xf32, #tpu.memory_space<vmem>>, %arg11: memref<64x32xf32, #tpu.memory_space<vmem>>, %arg12: memref<1x32xf32, #tpu.memory_space<vmem>>, %arg13: memref<32x32xf32, #tpu.memory_space<vmem>>, %arg14: memref<1x32xf32, #tpu.memory_space<vmem>>, %arg15: memref<64x4xf32, #tpu.memory_space<vmem>>, %arg16: memref<1x4xf32, #tpu.memory_space<vmem>>, %arg17: memref<8x4xf32, #tpu.memory_space<vmem>>) attributes {dimension_semantics = [], scalar_prefetch = 0 : i64, scratch_operands = 0 : i64, tpu.core_type = #tpu.core_type<tc>} {
    %c0 = arith.constant 0 : index
    %c0_0 = arith.constant 0 : index
    %0 = vector.load %arg4[%c0, %c0_0] : memref<8x4xf32, #tpu.memory_space<vmem>>, vector<8x4xf32>
    %c0_1 = arith.constant 0 : index
    %c0_2 = arith.constant 0 : index
    %1 = vector.load %arg5[%c0_1, %c0_2] : memref<4x4xf32, #tpu.memory_space<vmem>>, vector<4x4xf32>
    %cst = arith.constant dense<0.000000e+00> : vector<8x4xf32>
    %2 = tpu.matmul %0, %1, %cst {dimension_numbers = #tpu.dot_dimension_numbers<[1], [0], [0], [1], [0, 0, 1, 1], [], []>} : vector<8x4xf32>, vector<4x4xf32>, vector<8x4xf32> -> vector<8x4xf32>
    %c0_3 = arith.constant 0 : index
    %c0_4 = arith.constant 0 : index
    %3 = vector.load %arg6[%c0_3, %c0_4] : memref<1x4xf32, #tpu.memory_space<vmem>>, vector<1x4xf32>
    %4 = vector.broadcast %3 : vector<1x4xf32> to vector<8x4xf32>
    %5 = arith.addf %2, %4 : vector<8x4xf32>
    %c0_5 = arith.constant 0 : index
    %c0_6 = arith.constant 0 : index
    %6 = vector.load %arg3[%c0_5, %c0_6] : memref<8x6xf32, #tpu.memory_space<vmem>>, vector<8x6xf32>
    %c0_7 = arith.constant 0 : index
    %c0_8 = arith.constant 0 : index
    %7 = vector.load %arg7[%c0_7, %c0_8] : memref<6x32xf32, #tpu.memory_space<vmem>>, vector<6x32xf32>
    %cst_9 = arith.constant dense<0.000000e+00> : vector<8x32xf32>
    %8 = tpu.matmul %6, %7, %cst_9 {dimension_numbers = #tpu.dot_dimension_numbers<[1], [0], [0], [1], [0, 0, 1, 1], [], []>} : vector<8x6xf32>, vector<6x32xf32>, vector<8x32xf32> -> vector<8x32xf32>
    %c0_10 = arith.constant 0 : index
    %c0_11 = arith.constant 0 : index
    %9 = vector.load %arg8[%c0_10, %c0_11] : memref<1x32xf32, #tpu.memory_space<vmem>>, vector<1x32xf32>
    %10 = vector.broadcast %9 : vector<1x32xf32> to vector<8x32xf32>
    %11 = arith.addf %8, %10 : vector<8x32xf32>
    %cst_12 = arith.constant 0.000000e+00 : f32
    %12 = vector.broadcast %cst_12 : f32 to vector<8x32xf32>
    %13 = arith.maximumf %11, %12 : vector<8x32xf32>
    %c0_13 = arith.constant 0 : index
    %c0_14 = arith.constant 0 : index
    %14 = vector.load %arg9[%c0_13, %c0_14] : memref<32x32xf32, #tpu.memory_space<vmem>>, vector<32x32xf32>
    %cst_15 = arith.constant dense<0.000000e+00> : vector<8x32xf32>
    %15 = tpu.matmul %13, %14, %cst_15 {dimension_numbers = #tpu.dot_dimension_numbers<[1], [0], [0], [1], [0, 0, 1, 1], [], []>} : vector<8x32xf32>, vector<32x32xf32>, vector<8x32xf32> -> vector<8x32xf32>
    %c0_16 = arith.constant 0 : index
    %c0_17 = arith.constant 0 : index
    %16 = vector.load %arg10[%c0_16, %c0_17] : memref<1x32xf32, #tpu.memory_space<vmem>>, vector<1x32xf32>
    %17 = vector.broadcast %16 : vector<1x32xf32> to vector<8x32xf32>
    %18 = arith.addf %15, %17 : vector<8x32xf32>
    %19 = tpu.iota {dimensions = array<i32: 1>} : vector<16x8xi32>
    %c0_18 = arith.constant 0 : index
    %c0_19 = arith.constant 0 : index
    %20 = vector.load %arg0[%c0_18, %c0_19] : memref<16x1xi32, #tpu.memory_space<vmem>>, vector<16x1xi32>
    %21 = vector.broadcast %20 : vector<16x1xi32> to vector<16x8xi32>
    %22 = arith.cmpi eq, %19, %21 : vector<16x8xi32>
    %23 = arith.extui %22 : vector<16x8xi1> to vector<16x8xi32>
    %24 = arith.sitofp %23 : vector<16x8xi32> to vector<16x8xf32>
    %c0_20 = arith.constant 0 : index
    %c0_21 = arith.constant 0 : index
    %25 = vector.load %arg1[%c0_20, %c0_21] : memref<16x1xi32, #tpu.memory_space<vmem>>, vector<16x1xi32>
    %26 = vector.broadcast %25 : vector<16x1xi32> to vector<16x8xi32>
    %27 = arith.cmpi eq, %19, %26 : vector<16x8xi32>
    %28 = arith.extui %27 : vector<16x8xi1> to vector<16x8xi32>
    %29 = arith.sitofp %28 : vector<16x8xi32> to vector<16x8xf32>
    %cst_22 = arith.constant dense<0.000000e+00> : vector<16x32xf32>
    %30 = tpu.matmul %24, %18, %cst_22 {dimension_numbers = #tpu.dot_dimension_numbers<[1], [0], [0], [1], [0, 0, 1, 1], [], []>} : vector<16x8xf32>, vector<8x32xf32>, vector<16x32xf32> -> vector<16x32xf32>
    %cst_23 = arith.constant dense<0.000000e+00> : vector<16x32xf32>
    %31 = tpu.matmul %29, %18, %cst_23 {dimension_numbers = #tpu.dot_dimension_numbers<[1], [0], [0], [1], [0, 0, 1, 1], [], []>} : vector<16x8xf32>, vector<8x32xf32>, vector<16x32xf32> -> vector<16x32xf32>
    %32 = tpu.concatenate %30, %31 in 1 : vector<16x32xf32>, vector<16x32xf32> -> vector<16x64xf32>
    %c0_24 = arith.constant 0 : index
    %c0_25 = arith.constant 0 : index
    %33 = vector.load %arg11[%c0_24, %c0_25] : memref<64x32xf32, #tpu.memory_space<vmem>>, vector<64x32xf32>
    %cst_26 = arith.constant dense<0.000000e+00> : vector<16x32xf32>
    %34 = tpu.matmul %32, %33, %cst_26 {dimension_numbers = #tpu.dot_dimension_numbers<[1], [0], [0], [1], [0, 0, 1, 1], [], []>} : vector<16x64xf32>, vector<64x32xf32>, vector<16x32xf32> -> vector<16x32xf32>
    %c0_27 = arith.constant 0 : index
    %c0_28 = arith.constant 0 : index
    %35 = vector.load %arg12[%c0_27, %c0_28] : memref<1x32xf32, #tpu.memory_space<vmem>>, vector<1x32xf32>
    %36 = vector.broadcast %35 : vector<1x32xf32> to vector<16x32xf32>
    %37 = arith.addf %34, %36 : vector<16x32xf32>
    %cst_29 = arith.constant 0.000000e+00 : f32
    %38 = vector.broadcast %cst_29 : f32 to vector<16x32xf32>
    %39 = arith.maximumf %37, %38 : vector<16x32xf32>
    %c0_30 = arith.constant 0 : index
    %c0_31 = arith.constant 0 : index
    %40 = vector.load %arg13[%c0_30, %c0_31] : memref<32x32xf32, #tpu.memory_space<vmem>>, vector<32x32xf32>
    %cst_32 = arith.constant dense<0.000000e+00> : vector<16x32xf32>
    %41 = tpu.matmul %39, %40, %cst_32 {dimension_numbers = #tpu.dot_dimension_numbers<[1], [0], [0], [1], [0, 0, 1, 1], [], []>} : vector<16x32xf32>, vector<32x32xf32>, vector<16x32xf32> -> vector<16x32xf32>
    %c0_33 = arith.constant 0 : index
    %c0_34 = arith.constant 0 : index
    %42 = vector.load %arg14[%c0_33, %c0_34] : memref<1x32xf32, #tpu.memory_space<vmem>>, vector<1x32xf32>
    %43 = vector.broadcast %42 : vector<1x32xf32> to vector<16x32xf32>
    %44 = arith.addf %41, %43 : vector<16x32xf32>
    %45 = tpu.iota {dimensions = array<i32: 0>} : vector<8x16xi32>
    %c0_35 = arith.constant 0 : index
    %c0_36 = arith.constant 0 : index
    %46 = vector.load %arg2[%c0_35, %c0_36] : memref<1x16xi32, #tpu.memory_space<vmem>>, vector<1x16xi32>
    %47 = vector.broadcast %46 : vector<1x16xi32> to vector<8x16xi32>
    %48 = arith.cmpi eq, %45, %47 : vector<8x16xi32>
    %49 = arith.extui %48 : vector<8x16xi1> to vector<8x16xi32>
    %50 = arith.sitofp %49 : vector<8x16xi32> to vector<8x16xf32>
    %cst_37 = arith.constant dense<0.000000e+00> : vector<8x32xf32>
    %51 = tpu.matmul %50, %44, %cst_37 {dimension_numbers = #tpu.dot_dimension_numbers<[1], [0], [0], [1], [0, 0, 1, 1], [], []>} : vector<8x16xf32>, vector<16x32xf32>, vector<8x32xf32> -> vector<8x32xf32>
    %52 = tpu.concatenate %18, %51 in 1 : vector<8x32xf32>, vector<8x32xf32> -> vector<8x64xf32>
    %c0_38 = arith.constant 0 : index
    %c0_39 = arith.constant 0 : index
    %53 = vector.load %arg15[%c0_38, %c0_39] : memref<64x4xf32, #tpu.memory_space<vmem>>, vector<64x4xf32>
    %cst_40 = arith.constant dense<0.000000e+00> : vector<8x4xf32>
    %54 = tpu.matmul %52, %53, %cst_40 {dimension_numbers = #tpu.dot_dimension_numbers<[1], [0], [0], [1], [0, 0, 1, 1], [], []>} : vector<8x64xf32>, vector<64x4xf32>, vector<8x4xf32> -> vector<8x4xf32>
    %c0_41 = arith.constant 0 : index
    %c0_42 = arith.constant 0 : index
    %55 = vector.load %arg16[%c0_41, %c0_42] : memref<1x4xf32, #tpu.memory_space<vmem>>, vector<1x4xf32>
    %56 = vector.broadcast %55 : vector<1x4xf32> to vector<8x4xf32>
    %57 = arith.addf %54, %56 : vector<8x4xf32>
    %58 = arith.addf %5, %57 : vector<8x4xf32>
    %c0_43 = arith.constant 0 : index
    %c0_44 = arith.constant 0 : index
    %59 = vector.load %arg17[%c0_43, %c0_44] : memref<8x4xf32, #tpu.memory_space<vmem>>, vector<8x4xf32>
    tpu.vector_store %arg17[%c0_43, %c0_44], %58 {strides = array<i32>} : memref<8x4xf32, #tpu.memory_space<vmem>>, vector<8x4xf32>,
    return
  }
}

</mosaic_0001>

<llo_original>
// kernel: tpu_custom_call.1
$region0: #{tpu_custom_call.1}
  #allocation0 [shape = 'u32[]', space=smem, size = 0x4, offset = 0x4, fixed_abs, tag = 'smem constant byte address 0x4 - core index']
  #allocation1 [shape = 'u32[72,128]{1,0:T(1,128)}', space=vmem, size = 0x9000, scoped, tag = 'internal scratch']
  %s0 = inlined_call_operand.vmem [shape: s32[16,1], index: 0, kind: input, shape index: {}]
  %s1 = inlined_call_operand.vmem [shape: s32[16,1], index: 1, kind: input, shape index: {}]
  %s2 = inlined_call_operand.vmem [shape: s32[1,16], index: 2, kind: input, shape index: {}]
  %s3 = inlined_call_operand.vmem [shape: f32[8,6], index: 3, kind: input, shape index: {}]
  %s4 = inlined_call_operand.vmem [shape: f32[8,4], index: 4, kind: input, shape index: {}]
  %s5 = inlined_call_operand.vmem [shape: f32[4,4], index: 5, kind: input, shape index: {}]
  %s6 = inlined_call_operand.vmem [shape: f32[1,4], index: 6, kind: input, shape index: {}]
  %s7 = inlined_call_operand.vmem [shape: f32[6,32], index: 7, kind: input, shape index: {}]
  %s8 = inlined_call_operand.vmem [shape: f32[1,32], index: 8, kind: input, shape index: {}]
  %s9 = inlined_call_operand.vmem [shape: f32[32,32], index: 9, kind: input, shape index: {}]
  %s10 = inlined_call_operand.vmem [shape: f32[1,32], index: 10, kind: input, shape index: {}]
  %s11 = inlined_call_operand.vmem [shape: f32[64,32], index: 11, kind: input, shape index: {}]
  %s12 = inlined_call_operand.vmem [shape: f32[1,32], index: 12, kind: input, shape index: {}]
  %s13 = inlined_call_operand.vmem [shape: f32[32,32], index: 13, kind: input, shape index: {}]
  %s14 = inlined_call_operand.vmem [shape: f32[1,32], index: 14, kind: input, shape index: {}]
  %s15 = inlined_call_operand.vmem [shape: f32[64,4], index: 15, kind: input, shape index: {}]
  %s16 = inlined_call_operand.vmem [shape: f32[1,4], index: 16, kind: input, shape index: {}]
  %s17 = inlined_call_operand.vmem [shape: f32[8,4], index: 17, kind: output, shape index: {}]
  %s18 = sld [smem:[#allocation0]]
  $region78: #{tpu_custom_call.1} parent=0
    _
  %s20 = ssub.s32 1, %s18
  %s21 = scalar_select 0, %s20, %s18
  // Predicated region
  $region2: #{tpu_custom_call.1} parent=0 // pred_check
    _
  $region3: #{tpu_custom_call.1} parent=0 // pred_check_branch
    %23 = sbr.rel (0) target = $region5
  $region4: #{tpu_custom_call.1} parent=0 // pred_region
    _
  $region5: #{tpu_custom_call.1} parent=0 // pred_fallthru
    _
  // Predicated region
  $region6: #{tpu_custom_call.1} parent=0 // pred_check
    _
  $region7: #{tpu_custom_call.1} parent=0 // pred_check_branch
    %25 = sbr.rel (0) target = $region9
  $region8: #{tpu_custom_call.1} parent=0 // pred_region
    _
  $region9: #{tpu_custom_call.1} parent=0 // pred_fallthru
    _
  // Predicated region
  $region10: #{tpu_custom_call.1} parent=0 // pred_check
    _
  $region11: #{tpu_custom_call.1} parent=0 // pred_check_branch
    %27 = sbr.rel (0) target = $region13
  $region12: #{tpu_custom_call.1} parent=0 // pred_region
    _
  $region13: #{tpu_custom_call.1} parent=0 // pred_fallthru
    _
  // Predicated region
  $region14: #{tpu_custom_call.1} parent=0 // pred_check
    _
  $region15: #{tpu_custom_call.1} parent=0 // pred_check_branch
    %29 = sbr.rel (0) target = $region17
  $region16: #{tpu_custom_call.1} parent=0 // pred_region
    _
  $region17: #{tpu_custom_call.1} parent=0 // pred_fallthru
    _
  // Predicated region
  $region18: #{tpu_custom_call.1} parent=0 // pred_check
    _
  $region19: #{tpu_custom_call.1} parent=0 // pred_check_branch
    %31 = sbr.rel (0) target = $region21
  $region20: #{tpu_custom_call.1} parent=0 // pred_region
    _
  $region21: #{tpu_custom_call.1} parent=0 // pred_fallthru
    _
  // Predicated region
  $region22: #{tpu_custom_call.1} parent=0 // pred_check
    _
  $region23: #{tpu_custom_call.1} parent=0 // pred_check_branch
    %33 = sbr.rel (0) target = $region25
  $region24: #{tpu_custom_call.1} parent=0 // pred_region
    _
  $region25: #{tpu_custom_call.1} parent=0 // pred_fallthru
    _
  // Predicated region
  $region26: #{tpu_custom_call.1} parent=0 // pred_check
    _
  $region27: #{tpu_custom_call.1} parent=0 // pred_check_branch
    %35 = sbr.rel (0) target = $region29
  $region28: #{tpu_custom_call.1} parent=0 // pred_region
    _
  $region29: #{tpu_custom_call.1} parent=0 // pred_fallthru
    _
  // Predicated region
  $region30: #{tpu_custom_call.1} parent=0 // pred_check
    _
  $region31: #{tpu_custom_call.1} parent=0 // pred_check_branch
    %37 = sbr.rel (0) target = $region33
  $region32: #{tpu_custom_call.1} parent=0 // pred_region
    _
  $region33: #{tpu_custom_call.1} parent=0 // pred_fallthru
    _
  // Predicated region
  $region34: #{tpu_custom_call.1} parent=0 // pred_check
    _
  $region35: #{tpu_custom_call.1} parent=0 // pred_check_branch
    %39 = sbr.rel (0) target = $region37
  $region36: #{tpu_custom_call.1} parent=0 // pred_region
    _
  $region37: #{tpu_custom_call.1} parent=0 // pred_fallthru
    _
  // Predicated region
  $region38: #{tpu_custom_call.1} parent=0 // pred_check
    _
  $region39: #{tpu_custom_call.1} parent=0 // pred_check_branch
    %41 = sbr.rel (0) target = $region41
  $region40: #{tpu_custom_call.1} parent=0 // pred_region
    _
  $region41: #{tpu_custom_call.1} parent=0 // pred_fallthru
    _
  // Predicated region
  $region42: #{tpu_custom_call.1} parent=0 // pred_check
    _
  $region43: #{tpu_custom_call.1} parent=0 // pred_check_branch
    %43 = sbr.rel (0) target = $region45
  $region44: #{tpu_custom_call.1} parent=0 // pred_region
    _
  $region45: #{tpu_custom_call.1} parent=0 // pred_fallthru
    _
  // Predicated region
  $region46: #{tpu_custom_call.1} parent=0 // pred_check
    _
  $region47: #{tpu_custom_call.1} parent=0 // pred_check_branch
    %45 = sbr.rel (0) target = $region49
  $region48: #{tpu_custom_call.1} parent=0 // pred_region
    _
  $region49: #{tpu_custom_call.1} parent=0 // pred_fallthru
    _
  // Predicated region
  $region50: #{tpu_custom_call.1} parent=0 // pred_check
    _
  $region51: #{tpu_custom_call.1} parent=0 // pred_check_branch
    %47 = sbr.rel (0) target = $region53
  $region52: #{tpu_custom_call.1} parent=0 // pred_region
    _
  $region53: #{tpu_custom_call.1} parent=0 // pred_fallthru
    _
  // Predicated region
  $region54: #{tpu_custom_call.1} parent=0 // pred_check
    _
  $region55: #{tpu_custom_call.1} parent=0 // pred_check_branch
    %49 = sbr.rel (0) target = $region57
  $region56: #{tpu_custom_call.1} parent=0 // pred_region
    _
  $region57: #{tpu_custom_call.1} parent=0 // pred_fallthru
    _
  // Predicated region
  $region58: #{tpu_custom_call.1} parent=0 // pred_check
    _
  $region59: #{tpu_custom_call.1} parent=0 // pred_check_branch
    %51 = sbr.rel (0) target = $region61
  $region60: #{tpu_custom_call.1} parent=0 // pred_region
    _
  $region61: #{tpu_custom_call.1} parent=0 // pred_fallthru
    _
  // Predicated region
  $region62: #{tpu_custom_call.1} parent=0 // pred_check
    _
  $region63: #{tpu_custom_call.1} parent=0 // pred_check_branch
    %53 = sbr.rel (0) target = $region65
  $region64: #{tpu_custom_call.1} parent=0 // pred_region
    _
  $region65: #{tpu_custom_call.1} parent=0 // pred_fallthru
    _
  // Predicated region
  $region66: #{tpu_custom_call.1} parent=0 // pred_check
    _
  $region67: #{tpu_custom_call.1} parent=0 // pred_check_branch
    %55 = sbr.rel (0) target = $region69
  $region68: #{tpu_custom_call.1} parent=0 // pred_region
    _
  $region69: #{tpu_custom_call.1} parent=0 // pred_fallthru
    _
  %v56 = vld [vmem:[%s4] sm:$0xff]
  %v57 = vld [vmem:[%s5] sm:$0xf]
  %v58 = vld [vmem:[%s6] sm:$0x1]
  %v60 = vperm.slane %v58, 0
  %vm62 = vcmask 31744
  %v64 = vsel %vm62, %v56, 0
  %vm66 = vcmask 1043456
  %v68 = vsel %vm66, %v57, 0
  %70 = vmatpush.msra.mxu0 0.0
  %71 = vmatpush.msra.mxu0 0.0
  %72 = vmatpush.msra.mxu0 0.0
  %73 = vmatpush.msra.mxu0 0.0
  %74 = vmatpush.msra.mxu0 0.0
  %75 = vmatpush.msra.mxu0 0.0
  %76 = vmatpush.msra.mxu0 0.0
  %77 = vmatpush.msra.mxu0 0.0
  %78 = vmatpush.msra.mxu0 0.0
  %79 = vmatpush.msra.mxu0 0.0
  %80 = vmatpush.msra.mxu0 0.0
  %81 = vmatpush.msra.mxu0 0.0
  %82 = vmatpush.msra.mxu0 0.0
  %83 = vmatpush.msra.mxu0 0.0
  %84 = vmatpush.msra.mxu0 0.0
  %85 = vmatpush.msra.mxu0 %v68
  %86 = vmatmul.f32.gmra.mxu0 %v64
  %v87 = vpop.f32.mrf.mxu0
  %v88 = vadd.f32 %v60, %v87
  %89 = vdwg.mxu0
  %v90 = vld [vmem:[%s3] sm:$0xff]
  %v91 = vld [vmem:[%s7] sm:$0x3f]
  %v92 = vld [vmem:[%s8] sm:$0x1]
  %v94 = vperm.slane %v92, 0
  %vm96 = vcmask 48128
  %v98 = vsel %vm96, %v90, 0
  %vm100 = vcmask 1045504
  %v102 = vsel %vm100, %v91, 0
  %104 = vmatpush.msra.mxu0 0.0
  %105 = vmatpush.msra.mxu0 0.0
  %106 = vmatpush.msra.mxu0 0.0
  %107 = vmatpush.msra.mxu0 0.0
  %108 = vmatpush.msra.mxu0 0.0
  %109 = vmatpush.msra.mxu0 0.0
  %110 = vmatpush.msra.mxu0 0.0
  %111 = vmatpush.msra.mxu0 0.0
  %112 = vmatpush.msra.mxu0 0.0
  %113 = vmatpush.msra.mxu0 0.0
  %114 = vmatpush.msra.mxu0 0.0
  %115 = vmatpush.msra.mxu0 0.0
  %116 = vmatpush.msra.mxu0 0.0
  %117 = vmatpush.msra.mxu0 0.0
  %118 = vmatpush.msra.mxu0 0.0
  %119 = vmatpush.msra.mxu0 %v102
  %120 = vmatmul.f32.gmra.mxu0 %v98
  %v121 = vpop.f32.mrf.mxu0
  %v122 = vadd.f32 %v94, %v121
  %123 = vdwg.mxu0
  %v124 = vmax.f32 %v122, 0.0
  %v125 = vld [vmem:[%s9] sm:$0xff]
  %v126 = vld [vmem:[%s9 + $0x8] sm:$0xff]
  %v127 = vld [vmem:[%s9 + $0x10] sm:$0xff]
  %v128 = vld [vmem:[%s9 + $0x18] sm:$0xff]
  %v129 = vld [vmem:[%s10] sm:$0x1]
  %v131 = vperm.slane %v129, 0
  %vm133 = vcmask 261120
  %v135 = vsel %vm133, %v124, 0
  %137 = vmatpush.msra.mxu0 0.0
  %138 = vmatpush.msra.mxu0 0.0
  %139 = vmatpush.msra.mxu0 0.0
  %140 = vmatpush.msra.mxu0 0.0
  %141 = vmatpush.msra.mxu0 0.0
  %142 = vmatpush.msra.mxu0 0.0
  %143 = vmatpush.msra.mxu0 0.0
  %144 = vmatpush.msra.mxu0 0.0
  %145 = vmatpush.msra.mxu0 0.0
  %146 = vmatpush.msra.mxu0 0.0
  %147 = vmatpush.msra.mxu0 0.0
  %148 = vmatpush.msra.mxu0 0.0
  %149 = vmatpush.msra.mxu0 %v128
  %150 = vmatpush.msra.mxu0 %v127
  %151 = vmatpush.msra.mxu0 %v126
  %152 = vmatpush.msra.mxu0 %v125
  %153 = vmatmul.f32.gmra.mxu0 %v135
  %v154 = vpop.f32.mrf.mxu0
  %v155 = vadd.f32 %v131, %v154
  %156 = vdwg.mxu0
  %v157 = vlaneseq
  %v158 = vand.u32 %v157, 127
  %v159 = vld [vmem:[%s0] sm:$0xff]
  %v160 = vld [vmem:[%s0 + $0x8] sm:$0xff]
  %161 = vset.pattern.permute.xlu0 0
  %162 = vperm.xlu0 %161, %v159
  %v163 = vpop.permute.xlu0 %162
  %164 = vset.pattern.permute.xlu0 0
  %165 = vperm.xlu0 %164, %v160
  %v166 = vpop.permute.xlu0 %165
  %vm167 = vcmp.eq.s32.totalorder %v158, %v163
  %vm168 = vcmp.eq.s32.totalorder %v158, %v166
  %v169 = vsel %vm167, 1, 0
  %v170 = vsel %vm168, 1, 0
  %v171 = vcvt.s32.f32 %v169
  %v172 = vcvt.s32.f32 %v170
  %v173 = vld [vmem:[%s1] sm:$0xff]
  %v174 = vld [vmem:[%s1 + $0x8] sm:$0xff]
  %175 = vset.pattern.permute.xlu0 0
  %176 = vperm.xlu0 %175, %v173
  %v177 = vpop.permute.xlu0 %176
  %178 = vset.pattern.permute.xlu0 0
  %179 = vperm.xlu0 %178, %v174
  %v180 = vpop.permute.xlu0 %179
  %vm181 = vcmp.eq.s32.totalorder %v158, %v177
  %vm182 = vcmp.eq.s32.totalorder %v158, %v180
  %v183 = vsel %vm181, 1, 0
  %v184 = vsel %vm182, 1, 0
  %v185 = vcvt.s32.f32 %v183
  %v186 = vcvt.s32.f32 %v184
  %vm187 = vcmask 64512
  %v189 = vsel %vm187, %v171, 0
  %v192 = vsel %vm187, %v172, 0
  %194 = vmatpush.msra.mxu0 0.0
  %195 = vmatpush.msra.mxu0 0.0
  %196 = vmatpush.msra.mxu0 0.0
  %197 = vmatpush.msra.mxu0 0.0
  %198 = vmatpush.msra.mxu0 0.0
  %199 = vmatpush.msra.mxu0 0.0
  %200 = vmatpush.msra.mxu0 0.0
  %201 = vmatpush.msra.mxu0 0.0
  %202 = vmatpush.msra.mxu0 0.0
  %203 = vmatpush.msra.mxu0 0.0
  %204 = vmatpush.msra.mxu0 0.0
  %205 = vmatpush.msra.mxu0 0.0
  %206 = vmatpush.msra.mxu0 0.0
  %207 = vmatpush.msra.mxu0 0.0
  %208 = vmatpush.msra.mxu0 0.0
  %209 = vmatpush.msra.mxu0 %v155
  %210 = vmatmul.f32.gmra.mxu0 %v189
  %v211 = vpop.f32.mrf.mxu0
  %v212 = vadd.f32 0.0, %v211
  %213 = vmatmul.f32.gmra.mxu0 %v192
  %v214 = vpop.f32.mrf.mxu0
  %v215 = vadd.f32 0.0, %v214
  %216 = vdwg.mxu0
  %v218 = vsel %vm187, %v185, 0
  %v221 = vsel %vm187, %v186, 0
  %223 = vmatpush.msra.mxu0 0.0
  %224 = vmatpush.msra.mxu0 0.0
  %225 = vmatpush.msra.mxu0 0.0
  %226 = vmatpush.msra.mxu0 0.0
  %227 = vmatpush.msra.mxu0 0.0
  %228 = vmatpush.msra.mxu0 0.0
  %229 = vmatpush.msra.mxu0 0.0
  %230 = vmatpush.msra.mxu0 0.0
  %231 = vmatpush.msra.mxu0 0.0
  %232 = vmatpush.msra.mxu0 0.0
  %233 = vmatpush.msra.mxu0 0.0
  %234 = vmatpush.msra.mxu0 0.0
  %235 = vmatpush.msra.mxu0 0.0
  %236 = vmatpush.msra.mxu0 0.0
  %237 = vmatpush.msra.mxu0 0.0
  %238 = vmatpush.msra.mxu0 %v155
  %239 = vmatmul.f32.gmra.mxu0 %v218
  %v240 = vpop.f32.mrf.mxu0
  %v241 = vadd.f32 0.0, %v240
  %242 = vmatmul.f32.gmra.mxu0 %v221
  %v243 = vpop.f32.mrf.mxu0
  %v244 = vadd.f32 0.0, %v243
  %245 = vdwg.mxu0
  %248 = vrot.lane.b32.xlu0 %v241, 32
  %v249 = vpop.permute.xlu0 %248
  %250 = vrot.lane.b32.xlu0 %v244, 32
  %v251 = vpop.permute.xlu0 %250
  %v254 = vsel %vm133, %v212, %v249
  %v255 = vsel %vm133, %v215, %v251
  %v256 = vld [vmem:[%s11] sm:$0xff]
  %v257 = vld [vmem:[%s11 + $0x8] sm:$0xff]
  %v258 = vld [vmem:[%s11 + $0x10] sm:$0xff]
  %v259 = vld [vmem:[%s11 + $0x18] sm:$0xff]
  %v260 = vld [vmem:[%s11 + $0x20] sm:$0xff]
  %v261 = vld [vmem:[%s11 + $0x28] sm:$0xff]
  %v262 = vld [vmem:[%s11 + $0x30] sm:$0xff]
  %v263 = vld [vmem:[%s11 + $0x38] sm:$0xff]
  %v264 = vld [vmem:[%s12] sm:$0x1]
  %v266 = vperm.slane %v264, 0
  %vm268 = vcmask 523264
  %v270 = vsel %vm268, %v254, 0
  %v273 = vsel %vm268, %v255, 0
  %275 = vmatpush.msra.mxu0 0.0
  %276 = vmatpush.msra.mxu0 0.0
  %277 = vmatpush.msra.mxu0 0.0
  %278 = vmatpush.msra.mxu0 0.0
  %279 = vmatpush.msra.mxu0 0.0
  %280 = vmatpush.msra.mxu0 0.0
  %281 = vmatpush.msra.mxu0 0.0
  %282 = vmatpush.msra.mxu0 0.0
  %283 = vmatpush.msra.mxu0 %v263
  %284 = vmatpush.msra.mxu0 %v262
  %285 = vmatpush.msra.mxu0 %v261
  %286 = vmatpush.msra.mxu0 %v260
  %287 = vmatpush.msra.mxu0 %v259
  %288 = vmatpush.msra.mxu0 %v258
  %289 = vmatpush.msra.mxu0 %v257
  %290 = vmatpush.msra.mxu0 %v256
  %291 = vmatmul.f32.gmra.mxu0 %v270
  %v292 = vpop.f32.mrf.mxu0
  %v293 = vadd.f32 %v266, %v292
  %294 = vmatmul.f32.gmra.mxu0 %v273
  %v295 = vpop.f32.mrf.mxu0
  %v296 = vadd.f32 %v266, %v295
  %297 = vdwg.mxu0
  %v298 = vmax.f32 %v293, 0.0
  %v299 = vmax.f32 %v296, 0.0
  %v300 = vld [vmem:[%s13] sm:$0xff]
  %v301 = vld [vmem:[%s13 + $0x8] sm:$0xff]
  %v302 = vld [vmem:[%s13 + $0x10] sm:$0xff]
  %v303 = vld [vmem:[%s13 + $0x18] sm:$0xff]
  %v304 = vld [vmem:[%s14] sm:$0x1]
  %v306 = vperm.slane %v304, 0
  %v309 = vsel %vm133, %v298, 0
  %v312 = vsel %vm133, %v299, 0
  %314 = vmatpush.msra.mxu0 0.0
  %315 = vmatpush.msra.mxu0 0.0
  %316 = vmatpush.msra.mxu0 0.0
  %317 = vmatpush.msra.mxu0 0.0
  %318 = vmatpush.msra.mxu0 0.0
  %319 = vmatpush.msra.mxu0 0.0
  %320 = vmatpush.msra.mxu0 0.0
  %321 = vmatpush.msra.mxu0 0.0
  %322 = vmatpush.msra.mxu0 0.0
  %323 = vmatpush.msra.mxu0 0.0
  %324 = vmatpush.msra.mxu0 0.0
  %325 = vmatpush.msra.mxu0 0.0
  %326 = vmatpush.msra.mxu0 %v303
  %327 = vmatpush.msra.mxu0 %v302
  %328 = vmatpush.msra.mxu0 %v301
  %329 = vmatpush.msra.mxu0 %v300
  %330 = vmatmul.f32.gmra.mxu0 %v309
  %v331 = vpop.f32.mrf.mxu0
  %v332 = vadd.f32 %v306, %v331
  %333 = vmatmul.f32.gmra.mxu0 %v312
  %v334 = vpop.f32.mrf.mxu0
  %v335 = vadd.f32 %v306, %v334
  %336 = vdwg.mxu0
  %v337 = vlaneseq
  %v338 = vshrl.u32 %v337, 7
  %v339 = vld [vmem:[%s2] sm:$0x1]
  %v340 = vperm.slane %v339, 0
  %vm341 = vcmp.eq.s32.totalorder %v338, %v340
  %v342 = vsel %vm341, 1, 0
  %v343 = vcvt.s32.f32 %v342
  %vm344 = vcmask 130048
  %v346 = vsel %vm344, %v343, 0
  %348 = vmatpush.msra.mxu0 0.0
  %349 = vmatpush.msra.mxu0 0.0
  %350 = vmatpush.msra.mxu0 0.0
  %351 = vmatpush.msra.mxu0 0.0
  %352 = vmatpush.msra.mxu0 0.0
  %353 = vmatpush.msra.mxu0 0.0
  %354 = vmatpush.msra.mxu0 0.0
  %355 = vmatpush.msra.mxu0 0.0
  %356 = vmatpush.msra.mxu0 0.0
  %357 = vmatpush.msra.mxu0 0.0
  %358 = vmatpush.msra.mxu0 0.0
  %359 = vmatpush.msra.mxu0 0.0
  %360 = vmatpush.msra.mxu0 0.0
  %361 = vmatpush.msra.mxu0 0.0
  %362 = vmatpush.msra.mxu0 %v335
  %363 = vmatpush.msra.mxu0 %v332
  %364 = vmatmul.f32.gmra.mxu0 %v346
  %v365 = vpop.f32.mrf.mxu0
  %v366 = vadd.f32 0.0, %v365
  %367 = vdwg.mxu0
  %369 = vrot.lane.b32.xlu0 %v366, 32
  %v370 = vpop.permute.xlu0 %369
  %v372 = vsel %vm133, %v155, %v370
  %v373 = vld [vmem:[%s15] sm:$0xff]
  %v374 = vld [vmem:[%s15 + $0x8] sm:$0xff]
  %v375 = vld [vmem:[%s15 + $0x10] sm:$0xff]
  %v376 = vld [vmem:[%s15 + $0x18] sm:$0xff]
  %v377 = vld [vmem:[%s15 + $0x20] sm:$0xff]
  %v378 = vld [vmem:[%s15 + $0x28] sm:$0xff]
  %v379 = vld [vmem:[%s15 + $0x30] sm:$0xff]
  %v380 = vld [vmem:[%s15 + $0x38] sm:$0xff]
  %v381 = vld [vmem:[%s16] sm:$0x1]
  %v383 = vperm.slane %v381, 0
  %v386 = vsel %vm268, %v372, 0
  %388 = vmatpush.msra.mxu0 0.0
  %389 = vmatpush.msra.mxu0 0.0
  %390 = vmatpush.msra.mxu0 0.0
  %391 = vmatpush.msra.mxu0 0.0
  %392 = vmatpush.msra.mxu0 0.0
  %393 = vmatpush.msra.mxu0 0.0
  %394 = vmatpush.msra.mxu0 0.0
  %395 = vmatpush.msra.mxu0 0.0
  %396 = vmatpush.msra.mxu0 %v380
  %397 = vmatpush.msra.mxu0 %v379
  %398 = vmatpush.msra.mxu0 %v378
  %399 = vmatpush.msra.mxu0 %v377
  %400 = vmatpush.msra.mxu0 %v376
  %401 = vmatpush.msra.mxu0 %v375
  %402 = vmatpush.msra.mxu0 %v374
  %403 = vmatpush.msra.mxu0 %v373
  %404 = vmatmul.f32.gmra.mxu0 %v386
  %v405 = vpop.f32.mrf.mxu0
  %v406 = vadd.f32 %v383, %v405
  %407 = vdwg.mxu0
  %v408 = vadd.f32 %v88, %v406
  %409 = vst.msk [vmem:[%s17] sm:$0xff] %vm62, %v408
  // Predicated region
  $region70: #{tpu_custom_call.1} parent=0 // pred_check
    _
  $region71: #{tpu_custom_call.1} parent=0 // pred_check_branch
    %411 = sbr.rel (0) target = $region73
  $region72: #{tpu_custom_call.1} parent=0 // pred_region
    _
  $region73: #{tpu_custom_call.1} parent=0 // pred_fallthru
    _
  // Predicated region
  $region74: #{tpu_custom_call.1} parent=0 // pred_check
    _
  $region75: #{tpu_custom_call.1} parent=0 // pred_check_branch
    %413 = sbr.rel (0) target = $region77
  $region76: #{tpu_custom_call.1} parent=0 // pred_region
    _
  $region77: #{tpu_custom_call.1} parent=0 // pred_fallthru
    _

</llo_original>
